<compile_context>
chip_gen: v7x
topology: tpu7x:2x2x1
jax: 0.10.0
libtpu: 0.0.40
codegen_flags: <defaults>
</compile_context>

<pallas_src>
import functools
import math

import jax
import jax.numpy as jnp
from jax import lax
from jax.experimental import pallas as pl
from jax.experimental.pallas import tpu as pltpu


# ---------------------------------------------------------------------------
# Positional-encoding table (same math as the torch __init__).
# ---------------------------------------------------------------------------
def make_pe_table(d_model, max_len=5000, dtype=jnp.float32):
    """(max_len, d_model) sin/cos table.  The torch buffer's middle singleton
    dim (max_len, 1, d_model) is dropped: the kernel broadcasts over batch
    itself, keeping pe HBM traffic at S*D instead of S*B*D."""
    position = jnp.arange(max_len, dtype=jnp.float32)[:, None]                   # (L, 1)
    div_term = jnp.exp(
        jnp.arange(0, d_model, 2, dtype=jnp.float32) * (-math.log(10000.0) / d_model)
    )                                                                             # (D/2,)
    pe = jnp.zeros((max_len, d_model), dtype=jnp.float32)
    pe = pe.at[:, 0::2].set(jnp.sin(position * div_term))
    pe = pe.at[:, 1::2].set(jnp.cos(position * div_term))
    return pe.astype(dtype)


# ---------------------------------------------------------------------------
# Device-aware sizing helpers.
# ---------------------------------------------------------------------------
def _device_kind():
    try:
        return jax.devices()[0].device_kind.lower()
    except Exception:
        return ""


def _vmem_budget():
    """(vmem_limit_bytes, target x-tile bytes), generation-aware."""
    kind = _device_kind()
    if "v7" in kind or "7x" in kind:
        # v7x: only 64 MiB physical VMEM per TensorCore -> smaller tiles + limit.
        return 44 * 1024 * 1024, 4 * 1024 * 1024
    # v5e / v6e: 128 MiB physical VMEM -> push tiles up to ~7 MiB.
    return 64 * 1024 * 1024, 7 * 1024 * 1024


def _compute_dtype(x_dtype):
    """bf16 add/select run natively on v6e/v7x VPUs; v5e (and older) lack bf16
    VALU, so upcast there.  f32 inputs always compute in f32."""
    if jnp.dtype(x_dtype) != jnp.dtype(jnp.bfloat16):
        return jnp.float32
    kind = _device_kind()
    if any(t in kind for t in ("v5 lite", "v5e", "v5lite", "v4", "v3", "v2")):
        return jnp.float32
    return jnp.bfloat16


def _choose_batch_chunk(B, D, elem_bytes, sublane, target_tile_bytes):
    """Split the flattened lane dim (B*D) by whole batches only when even a
    minimal sublane-row slab exceeds the tile target, and only when D is
    lane-aligned so split blocks keep unmasked, multiple-of-128 stores."""
    if B == 1 or D % 128 != 0:
        return B
    b_chunk = B
    while (b_chunk > 1 and b_chunk % 2 == 0
           and b_chunk * D * elem_bytes * sublane > target_tile_bytes):
        b_chunk //= 2
    return b_chunk


def _choose_seq_tile(seq_len, row_bytes, sublane, target_tile_bytes, min_steps=4):
    """Rows per grid step: ~target_tile_bytes per x tile, rounded to the dtype's
    sublane packing, and capped so the grid keeps >= min_steps steps when S
    allows it (grid=1 means no DMA/compute overlap and, on v7x, no sharding of
    the parallel axis across its two TensorCores)."""
    rows = (target_tile_bytes // max(1, row_bytes)) // sublane * sublane
    rows = max(sublane, rows)
    if seq_len >= min_steps * sublane:
        cap = max(sublane, (seq_len // min_steps) // sublane * sublane)
        rows = min(rows, cap)
    return min(rows, seq_len)


# ---------------------------------------------------------------------------
# Kernel.
# ---------------------------------------------------------------------------
def _pe_dropout_kernel(seed_ref, x_ref, pe_ref, o_ref, *,
                       batch_chunk, d_model, bd_total, dropout_p,
                       apply_dropout, compute_dtype, lane_sliced, use_hw_prng):
    # x_ref / o_ref : (ts, batch_chunk * D)      pe_ref : (ts, D) float32
    ts, lane_block = x_ref.shape
    D = d_model

    pe_tile = pe_ref[...].astype(compute_dtype)                       # (ts, D)

    drop = apply_dropout and 0.0 < dropout_p < 1.0
    zero_all = apply_dropout and dropout_p >= 1.0        # torch: p=1 zeroes all

    if drop:
        # Keep with probability (1 - p) via an integer-threshold compare.
        thresh = jnp.uint32(min(int(round(dropout_p * float(1 << 32))), (1 << 32) - 1))
        scale = float(1.0 / (1.0 - dropout_p))

        if use_hw_prng:
            # TPU hardware PRNG: much cheaper than the u32 hash on the VALU slot
            # (which saturates first on v7x in training mode).  Per-tile seed so
            # every grid step draws an independent stream.
            pltpu.prng_seed(seed_ref[0], pl.program_id(0), pl.program_id(1))

            def keep_mask(shape, _col_off):
                bits = pltpu.bitcast(pltpu.prng_random_bits(shape), jnp.uint32)
                return bits >= thresh
        else:
            # Portable counter-hash fallback (plain u32 VPU ops -> lowers on any
            # backend, incl. interpret mode).  The counter uses the *global*
            # element index, so the mask is independent of tile size.  The
            # counter multiply is hoisted out of the per-batch loop and the
            # final low-bit xorshift is dropped (the >= threshold compare is
            # decided by the high bits).
            seed_u = seed_ref[0].astype(jnp.uint32)
            seed_mix = seed_u * jnp.uint32(0x9E3779B1) + jnp.uint32(0x7F4A7C15)
            row0 = (pl.program_id(0) * ts).astype(jnp.uint32)
            col0 = (pl.program_id(1) * lane_block).astype(jnp.uint32)
            cshape = (ts, D) if lane_sliced else (ts, lane_block)
            row = lax.broadcasted_iota(jnp.int32, cshape, 0).astype(jnp.uint32)
            col = lax.broadcasted_iota(jnp.int32, cshape, 1).astype(jnp.uint32)
            counter_base = (row + row0) * jnp.uint32(bd_total) + col + col0

            def keep_mask(_shape, col_off):
                h = (counter_base + col_off) ^ seed_mix
                h = (h ^ (h >> jnp.uint32(16))) * jnp.uint32(0x85EBCA6B)
                h = (h ^ (h >> jnp.uint32(13))) * jnp.uint32(0xC2B2AE35)
                return h >= thresh

    def finalize(y, col_off):
        if zero_all:
            return jnp.zeros_like(y)
        if drop:
            return jnp.where(keep_mask(y.shape, col_off), y * scale, 0.0)
        return y

    if lane_sliced:
        # D is lane-aligned: process one D-wide (full-vreg) column block per
        # batch and write it directly.  No jnp.tile materialization of a
        # (ts, B*D) pe broadcast, no extra vst/vld traffic.
        for b in range(batch_chunk):                      # static unroll (small B)
            sl = pl.ds(b * D, D)
            y = x_ref[:, sl].astype(compute_dtype) + pe_tile
            o_ref[:, sl] = finalize(y, jnp.uint32(b * D)).astype(o_ref.dtype)
    else:
        # Fallback for D % 128 != 0: per-batch slices would be lane-misaligned
        # (masked stores + relayouts), so broadcast pe across the flattened
        # lanes and process the whole tile at once.
        pe_b = jnp.tile(pe_tile, (1, batch_chunk)) if batch_chunk > 1 else pe_tile
        y = x_ref[...].astype(compute_dtype) + pe_b
        o_ref[...] = finalize(y, jnp.uint32(0)).astype(o_ref.dtype)


# ---------------------------------------------------------------------------
# Wrapper.
# ---------------------------------------------------------------------------
def positional_encoding(x, pe, *, dropout_p=0.1, training=False, seed=0,
                        seq_block=None):
    """x: (S, B, D).  Returns dropout(x + pe[:S, None, :]) with PyTorch semantics."""
    S, B, D = x.shape
    assert pe.shape[0] >= S and pe.shape[1] == D, "pe table too small / wrong d_model"
    pe_f32 = pe[:S].astype(jnp.float32)                   # keep pe in f32 (cheap: 1/B of x)

    # Lane-dense view: collapse (S, B, D) -> (S, B*D) so block last dims are
    # large multiples of 128 and stores are unmasked full vregs.
    bd = B * D
    x2 = x.reshape(S, bd)

    elem_bytes = jnp.dtype(x.dtype).itemsize
    sublane = max(8, 32 // elem_bytes)                    # 8 f32 / 16 bf16 / 32 int8
    vmem_limit, tile_target = _vmem_budget()

    b_chunk = _choose_batch_chunk(B, D, elem_bytes, sublane, tile_target)
    lane_block = b_chunk * D
    row_bytes = lane_block * elem_bytes
    ts = seq_block if seq_block is not None else _choose_seq_tile(
        S, row_bytes, sublane, tile_target)
    assert ts == S or ts % sublane == 0, (
        f"seq tile must be a multiple of {sublane} (or the full S)")

    grid = (pl.cdiv(S, ts), B // b_chunk)

    lane_sliced = (D % 128 == 0)
    use_hw_prng = (jax.default_backend() == "tpu") and lane_sliced
    if training and not use_hw_prng and 0.0 < dropout_p < 1.0:
        assert S * B * D <= (1 << 32), "counter-hash dropout mask would wrap (uint32)"

    compute_dtype = _compute_dtype(x.dtype)
    seed_arr = jnp.array([seed], dtype=jnp.int32)

    kernel = functools.partial(
        _pe_dropout_kernel,
        batch_chunk=b_chunk,
        d_model=D,
        bd_total=bd,
        dropout_p=float(dropout_p),
        apply_dropout=bool(training),
        compute_dtype=compute_dtype,
        lane_sliced=lane_sliced,
        use_hw_prng=use_hw_prng,
    )

    def build(aliases):
        return pl.pallas_call(
            kernel,
            out_shape=jax.ShapeDtypeStruct((S, bd), x.dtype),
            grid_spec=pltpu.PrefetchScalarGridSpec(
                num_scalar_prefetch=1,
                grid=grid,
                in_specs=[
                    pl.BlockSpec((ts, lane_block), lambda i, j, seed: (i, j)),  # x
                    pl.BlockSpec((ts, D), lambda i, j, seed: (i, 0)),           # pe (f32)
                ],
                out_specs=pl.BlockSpec((ts, lane_block), lambda i, j, seed: (i, j)),
            ),
            # Donate x2 (operand index 1: after the scalar-prefetch seed) into the
            # output; halves peak HBM footprint when this is a dead intermediate
            # under jit.
            input_output_aliases=aliases,
            compiler_params=pltpu.CompilerParams(
                dimension_semantics=("parallel", "parallel"),
                vmem_limit_bytes=vmem_limit,
            ),
            cost_estimate=pl.CostEstimate(
                flops=2 * S * B * D,
                transcendentals=0,
                bytes_accessed=2 * S * bd * elem_bytes + S * D * 4,
            ),
        )

    try:
        out2 = build({1: 0})(seed_arr, x2, pe_f32)
    except (ValueError, TypeError, KeyError):
        # Alias-index bookkeeping differs across jax versions; correctness first.
        out2 = build({})(seed_arr, x2, pe_f32)

    return out2.reshape(S, B, D)


# ---------------------------------------------------------------------------
# Demo / self-check.
# ---------------------------------------------------------------------------
if __name__ == "__main__":
    # Small shapes consistent with the module's forward: (seq, batch, d_model).
    S, B, D = 16, 2, 128
    MAX_LEN = 64   # same formula as max_len=5000; smaller table for the demo

    key = jax.random.PRNGKey(0)
    x = jax.random.normal(key, (S, B, D), dtype=jnp.float32)
    pe = make_pe_table(D, max_len=MAX_LEN)

    # Eval mode (dropout is identity) -- numerically checkable.
    out_eval = jax.block_until_ready(
        positional_encoding(x, pe, dropout_p=0.1, training=False))
    ref = x + pe[:S][:, None, :]
    assert out_eval.shape == (S, B, D)
    assert jnp.allclose(out_eval, ref, atol=1e-6, rtol=1e-6), "mismatch vs reference"

    # Training mode exercises the in-kernel inverted-dropout path.
    # TODO(synk): dropout mask uses the TPU HW PRNG (or a counter hash off-TPU);
    # it matches PyTorch dropout *semantics* but not torch's exact RNG stream.
    p = 0.1
    out_train = jax.block_until_ready(
        positional_encoding(x, pe, dropout_p=p, training=True, seed=0))
    assert out_train.shape == (S, B, D)
    # Every element is either dropped (0) or kept and scaled by 1/(1-p).
    scaled = ref / (1.0 - p)
    ok = jnp.isclose(out_train, scaled, atol=1e-5) | jnp.isclose(out_train, 0.0, atol=1e-7)
    assert bool(jnp.all(ok)), "dropout output has values other than 0 or (x+pe)/(1-p)"
    # Keep-rate sanity (loose statistical bound: ~90% kept at p=0.1).
    keep_frac = float(jnp.mean((out_train != 0).astype(jnp.float32)))
    assert 0.7 < keep_frac < 0.995, f"implausible dropout keep fraction {keep_frac}"

    print("KERNEL_OK")
</pallas_src>

<mosaic_0001>
module attributes {stable_mosaic.version = 11 : i64} {
  func.func @_pe_dropout_kernel(%arg0: i32, %arg1: i32, %arg2: memref<1xi32, #tpu.memory_space<smem>>, %arg3: memref<16x256xf32, #tpu.memory_space<vmem>>, %arg4: memref<16x128xf32, #tpu.memory_space<vmem>>, %arg5: memref<16x256xf32, #tpu.memory_space<vmem>>) attributes {dimension_semantics = [#tpu.dimension_semantics<parallel>, #tpu.dimension_semantics<parallel>], iteration_bounds = array<i64: 1, 1>, scalar_prefetch = 1 : i64, scratch_operands = 0 : i64, tpu.core_type = #tpu.core_type<tc>, window_params = [{transform_indices = @transform_0, window_bounds = array<i64: 16, 256>}, {transform_indices = @transform_1, window_bounds = array<i64: 16, 128>}, {transform_indices = @transform_2, window_bounds = array<i64: 16, 256>}]} {
    %c0 = arith.constant 0 : index
    %c0_0 = arith.constant 0 : index
    %0 = vector.load %arg4[%c0, %c0_0] : memref<16x128xf32, #tpu.memory_space<vmem>>, vector<16x128xf32>
    %c0_1 = arith.constant 0 : index
    %c0_2 = arith.constant 0 : index
    %1 = vector.load %arg3[%c0_1, %c0_2] : memref<16x256xf32, #tpu.memory_space<vmem>>, vector<16x128xf32>
    %2 = arith.addf %1, %0 : vector<16x128xf32>
    %c0_3 = arith.constant 0 : index
    %c0_4 = arith.constant 0 : index
    %3 = vector.load %arg5[%c0_3, %c0_4] : memref<16x256xf32, #tpu.memory_space<vmem>>, vector<16x128xf32>
    tpu.vector_store %arg5[%c0_3, %c0_4], %2 {strides = array<i32>} : memref<16x256xf32, #tpu.memory_space<vmem>>, vector<16x128xf32>,
    %c0_5 = arith.constant 0 : index
    %c128 = arith.constant 128 : index
    %4 = vector.load %arg3[%c0_5, %c128] : memref<16x256xf32, #tpu.memory_space<vmem>>, vector<16x128xf32>
    %5 = arith.addf %4, %0 : vector<16x128xf32>
    %c0_6 = arith.constant 0 : index
    %c128_7 = arith.constant 128 : index
    %6 = vector.load %arg5[%c0_6, %c128_7] : memref<16x256xf32, #tpu.memory_space<vmem>>, vector<16x128xf32>
    tpu.vector_store %arg5[%c0_6, %c128_7], %5 {strides = array<i32>} : memref<16x256xf32, #tpu.memory_space<vmem>>, vector<16x128xf32>,
    return
  }
  func.func @transform_0(%arg0: i32, %arg1: i32, %arg2: memref<1xi32, #tpu.memory_space<smem>>) -> (i32, i32) {
    %c0_i32 = arith.constant 0 : i32
    return %arg0, %arg1 : i32, i32
  }
  func.func @transform_1(%arg0: i32, %arg1: i32, %arg2: memref<1xi32, #tpu.memory_space<smem>>) -> (i32, i32) {
    %c0_i32 = arith.constant 0 : i32
    %c0_i32_0 = arith.constant 0 : i32
    return %arg0, %c0_i32 : i32, i32
  }
  func.func @transform_2(%arg0: i32, %arg1: i32, %arg2: memref<1xi32, #tpu.memory_space<smem>>) -> (i32, i32) {
    %c0_i32 = arith.constant 0 : i32
    return %arg0, %arg1 : i32, i32
  }
}

</mosaic_0001>

<llo_original>
// kernel: tpu_custom_call.1
$region0: #{tpu_custom_call.1}
  #allocation0 [shape = 'u32[]', space=smem, size = 0x4, offset = 0x4, fixed_abs, tag = 'smem constant byte address 0x4 - core index']
  #allocation1 [shape = 'u32[144,128]{1,0:T(1,128)}', space=vmem, size = 0x12000, scoped, tag = 'internal scratch']
  #allocation2 [shape = 's32[1]{0}', space=sflag, size = 0x4, scoped, tag = 'scoped memory for tpu_custom_call.1']
  #allocation3 [shape = 's32[1]{0:T(128)S(6)}', space=smem, size = 0x200, scoped, tag = 'prefetched SMEM operand 0']
  %s0 = inlined_call_operand.<no memory space> [shape: s32[1], index: 0, kind: input, shape index: {}]
  %s1 = inlined_call_operand.hbm [shape: f32[16,256], index: 1, kind: input, shape index: {}, may-alias: {1,3}]
  %s2 = inlined_call_operand.hbm [shape: f32[16,128], index: 2, kind: input, shape index: {}]
  %s3 = inlined_call_operand.hbm [shape: f32[16,256], index: 3, kind: output, shape index: {}, may-alias: {1,3}]
  %s4 = sld [smem:[#allocation0]]
  $region26: #{tpu_custom_call.1} parent=0
    _
  %s6 = ssub.s32 1, %s4
  %s7 = scalar_select 0, %s6, %s4
  %8 = sst [smem:[#allocation3]] %s0
  $region1: #{tpu_custom_call.1} parent=0
    #allocation4 [shape = 'u8[16384]{0}', space=vmem, size = 0x4000, scoped, tag = 'input window, operand 1, single buffered']
    #allocation5 [shape = 's32[1]{0}', space=sflag, size = 0x4, scoped, tag = 'scoped memory for tpu_custom_call.1']
    #allocation6 [shape = 's32[1]{0}', space=sflag, size = 0x4, scoped, tag = 'scoped memory for tpu_custom_call.1']
    #allocation7 [shape = 'u8[8192]{0}', space=vmem, size = 0x2000, scoped, tag = 'input window, operand 2, single buffered']
    #allocation8 [shape = 's32[1]{0}', space=sflag, size = 0x4, scoped, tag = 'scoped memory for tpu_custom_call.1']
    #allocation9 [shape = 'u8[16384]{0}', space=vmem, size = 0x4000, scoped, tag = 'output window, operand 0, single buffered']
    %9 = vsyncpa [#allocation5], 0
    %10 = vsyncpa [#allocation8], 0
    %11 = vsyncpa [#allocation6], 0
    // Predicated region
    $region2: #{tpu_custom_call.1} parent=1 // pred_check
      _
    $region3: #{tpu_custom_call.1} parent=1 // pred_check_branch
      %13 = sbr.rel (0) target = $region5
    $region4: #{tpu_custom_call.1} parent=1 // pred_region
      %s15 = ssub.s32 512, 512
      %16 = vsyncadd [#allocation5], %s15
      %s17 = sshll.u32 [#allocation4], 4
      %s18 = int_to_ptr.vmem [resolvable:$true] %s17
      %23 = dma.hbm_to_vmem [thread:$0]  %s1, 512, %s18, [#allocation5], 256, 256, 16
    $region5: #{tpu_custom_call.1} parent=1 // pred_fallthru
      _
    // Predicated region
    $region6: #{tpu_custom_call.1} parent=1 // pred_check
      _
    $region7: #{tpu_custom_call.1} parent=1 // pred_check_branch
      %25 = sbr.rel (0) target = $region9
    $region8: #{tpu_custom_call.1} parent=1 // pred_region
      %s27 = ssub.s32 256, 256
      %28 = vsyncadd [#allocation8], %s27
      %s29 = sshll.u32 [#allocation7], 4
      %s30 = int_to_ptr.vmem [resolvable:$true] %s29
      %35 = dma.hbm_to_vmem [thread:$0]  %s2, 256, %s30, [#allocation8], 128, 128, 8
    $region9: #{tpu_custom_call.1} parent=1 // pred_fallthru
      _
    // Predicated region
    $region10: #{tpu_custom_call.1} parent=1 // pred_check
      _
    $region11: #{tpu_custom_call.1} parent=1 // pred_check_branch
      %37 = sbr.rel (0) target = $region13
    $region12: #{tpu_custom_call.1} parent=1 // pred_region
      %38 = dma.done [#allocation5], 512
    $region13: #{tpu_custom_call.1} parent=1 // pred_fallthru
      _
    // Predicated region
    $region14: #{tpu_custom_call.1} parent=1 // pred_check
      _
    $region15: #{tpu_custom_call.1} parent=1 // pred_check_branch
      %40 = sbr.rel (0) target = $region17
    $region16: #{tpu_custom_call.1} parent=1 // pred_region
      %41 = dma.done [#allocation8], 256
    $region17: #{tpu_custom_call.1} parent=1 // pred_fallthru
      _
    %v42 = vld [vmem:[#allocation7] sm:$0xff]
    %v43 = vld [vmem:[#allocation7 + $0x8] sm:$0xff]
    %v44 = vld [vmem:[#allocation4] sm:$0xff]
    %v45 = vld [vmem:[#allocation4 + $0x10] sm:$0xff]
    %v46 = vadd.f32 %v44, %v42
    %v47 = vadd.f32 %v45, %v43
    %48 = vst [vmem:[#allocation9] sm:$0xff] %v46
    %49 = vst [vmem:[#allocation9 + $0x10] sm:$0xff] %v47
    %v50 = vld [vmem:[#allocation4 + $0x8] sm:$0xff]
    %v51 = vld [vmem:[#allocation4 + $0x18] sm:$0xff]
    %v52 = vadd.f32 %v50, %v42
    %v53 = vadd.f32 %v51, %v43
    %54 = vst [vmem:[#allocation9 + $0x8] sm:$0xff] %v52
    %55 = vst [vmem:[#allocation9 + $0x18] sm:$0xff] %v53
    // Predicated region
    $region18: #{tpu_custom_call.1} parent=1 // pred_check
      _
    $region19: #{tpu_custom_call.1} parent=1 // pred_check_branch
      %57 = sbr.rel (0) target = $region21
    $region20: #{tpu_custom_call.1} parent=1 // pred_region
      %s59 = ssub.s32 512, 512
      %60 = vsyncadd [#allocation6], %s59
      %s61 = sshll.u32 [#allocation9], 4
      %s62 = int_to_ptr.vmem [resolvable:$true] %s61
      %67 = dma.vmem_to_hbm [thread:$0]  %s62, 512, %s3, [#allocation6], 256, 256, 16
    $region21: #{tpu_custom_call.1} parent=1 // pred_fallthru
      _
    // Predicated region
    $region22: #{tpu_custom_call.1} parent=1 // pred_check
      _
    $region23: #{tpu_custom_call.1} parent=1 // pred_check_branch
      %69 = sbr.rel (0) target = $region25
    $region24: #{tpu_custom_call.1} parent=1 // pred_region
      %70 = dma.done [#allocation6], 512
    $region25: #{tpu_custom_call.1} parent=1 // pred_fallthru
      _
    %71 = vsyncpa [#allocation5], 1
    %72 = vsyncpa [#allocation8], 1
    %73 = vsyncpa [#allocation6], 1

</llo_original>
